<compile_context>
chip_gen: v5e
topology: v5e:2x2
jax: 0.10.0
libtpu: 0.0.40
codegen_flags: <defaults>
</compile_context>

<pallas_src>
import math

import jax
import jax.numpy as jnp
from jax import lax
from jax.experimental import pallas as pl
from jax.experimental.pallas import tpu as pltpu

D_MODEL = 32
MAX_LEN = 5000
DROPOUT_P = 0.1
_KEEP_SCALE = 1.0 / (1.0 - DROPOUT_P)
_DROP_THRESHOLD = int(round(DROPOUT_P * (2 ** 32)))   # P(hash < thr) == p
_GOLDEN = 0x9E3779B9


def _build_pe_table(d_model: int, max_len: int) -> jnp.ndarray:
    """Deterministic sinusoidal PE table, identical math to the nn.Module."""
    position = jnp.arange(max_len, dtype=jnp.float32)[:, None]            # (L, 1)
    div_term = jnp.exp(
        jnp.arange(0, d_model, 2, dtype=jnp.float32) * (-math.log(10000.0) / d_model)
    )                                                                     # (D/2,)
    pe = jnp.zeros((max_len, d_model), dtype=jnp.float32)
    pe = pe.at[:, 0::2].set(jnp.sin(position * div_term))
    pe = pe.at[:, 1::2].set(jnp.cos(position * div_term))
    return pe                                                             # (L, D)


def _lowbias32(u):
    """Avalanche hash on uint32 values (pure jnp ops: works in-kernel and on host)."""
    u = u ^ (u >> jnp.uint32(16))
    u = u * jnp.uint32(0x7FEB352D)
    u = u ^ (u >> jnp.uint32(15))
    u = u * jnp.uint32(0x846CA68B)
    u = u ^ (u >> jnp.uint32(16))
    return u


def _keep_mask(counter_u32, seed_u32):
    """Bernoulli(keep = 1 - p) mask, deterministic in (element index, seed)."""
    u = _lowbias32(counter_u32 + seed_u32 * jnp.uint32(_GOLDEN))
    return u >= jnp.uint32(_DROP_THRESHOLD)


def _pos_enc_dropout_kernel(seed_ref, x_ref, pe_ref, o_ref):
    # seed_ref: SMEM (1,) int32
    # x_ref/o_ref: VMEM (tS, B*D) tile of x viewed as [S, B*D]
    # pe_ref:      VMEM (tS, D)   tile of the positional-encoding table
    tS, W = x_ref.shape
    D = pe_ref.shape[-1]
    B = W // D

    # Positional encoding broadcast over batch: column b*D + d needs pe[s, d].
    pe = pe_ref[...]                                                # (tS, D)
    pe_row = pe if B == 1 else jnp.concatenate([pe] * B, axis=-1)   # (tS, W)
    y = x_ref[...] + pe_row

    # Counter-based dropout mask keyed on the GLOBAL element index, so tiling
    # the grid never repeats the random stream across tiles.
    row0 = pl.program_id(0) * tS
    rows = (row0 + lax.broadcasted_iota(jnp.int32, (tS, W), 0)).astype(jnp.uint32)
    cols = lax.broadcasted_iota(jnp.int32, (tS, W), 1).astype(jnp.uint32)
    counter = rows * jnp.uint32(W) + cols
    keep = _keep_mask(counter, seed_ref[0].astype(jnp.uint32))

    out = jnp.where(keep, y * jnp.float32(_KEEP_SCALE), jnp.float32(0.0))
    o_ref[...] = out.astype(o_ref.dtype)


def _choose_block_rows(n_rows: int, row_width: int, itemsize: int,
                       target_bytes: int = 2 * 1024 * 1024) -> int:
    """~2 MiB row tiles (safe for v7x VMEM with double-buffering), 8-aligned."""
    rows = max(1, target_bytes // max(1, row_width * itemsize))
    if rows >= n_rows:
        return n_rows                      # full extent along rows: always legal
    return max(8, (rows // 8) * 8)         # multiple of 8 (sublane rule)


def positional_encoding_forward(x: jnp.ndarray,
                                pe_table: jnp.ndarray,
                                seed: int = 0) -> jnp.ndarray:
    """x: [seq_len, batch, d_model]. Returns dropout(x + pe[:seq_len]), same shape/dtype."""
    S, B, D = x.shape
    W = B * D
    x2 = x.reshape(S, W)                   # lane-dense view (merges trailing dims, no copy)
    pe_slice = pe_table[:S]                # (S, D) == pe[:x.size(0)]
    seed_arr = jnp.asarray([seed], dtype=jnp.int32)

    block_rows = _choose_block_rows(S, W, jnp.dtype(x.dtype).itemsize)
    grid = (pl.cdiv(S, block_rows),)

    out2 = pl.pallas_call(
        _pos_enc_dropout_kernel,
        out_shape=jax.ShapeDtypeStruct((S, W), x.dtype),
        grid=grid,
        in_specs=[
            pl.BlockSpec(memory_space=pltpu.MemorySpace.SMEM),      # seed scalar
            pl.BlockSpec((block_rows, W), lambda i: (i, 0)),        # x tile
            pl.BlockSpec((block_rows, D), lambda i: (i, 0)),        # pe tile
        ],
        out_specs=pl.BlockSpec((block_rows, W), lambda i: (i, 0)),
        compiler_params=pltpu.CompilerParams(
            dimension_semantics=("parallel",)),   # row tiles are independent (v7x: 2 TCs)
    )(seed_arr, x2, pe_slice)
    return out2.reshape(S, B, D)


if __name__ == "__main__":
    key = jax.random.PRNGKey(0)
    seq_len, batch, d_model = 8, 2, D_MODEL
    seed = 0

    x = jax.random.normal(key, (seq_len, batch, d_model), dtype=jnp.float32)
    pe_table = _build_pe_table(d_model, MAX_LEN)

    out = positional_encoding_forward(x, pe_table, seed=seed)
    out = jax.block_until_ready(out)
    assert out.shape == x.shape and out.dtype == x.dtype

    # Reference: same math + the same deterministic counter-based dropout mask.
    counter = jnp.arange(seq_len * batch * d_model, dtype=jnp.uint32
                         ).reshape(seq_len, batch, d_model)
    keep = _keep_mask(counter, jnp.uint32(seed))
    expected = jnp.where(
        keep,
        (x + pe_table[:seq_len][:, None, :]) * jnp.float32(_KEEP_SCALE),
        jnp.float32(0.0))
    assert jnp.allclose(out, expected, atol=1e-6, rtol=1e-6), \
        float(jnp.max(jnp.abs(out - expected)))

    # Mask sanity: dropped fraction should be roughly p (loose bounds).
    drop_frac = float(jnp.mean((~keep).astype(jnp.float32)))
    assert 0.0 < drop_frac < 0.4, drop_frac

    print("KERNEL_OK")
</pallas_src>

<mosaic_0001>
module attributes {stable_mosaic.version = 11 : i64} {
  func.func @_pos_enc_dropout_kernel(%arg0: i32, %arg1: memref<1xi32, #tpu.memory_space<smem>>, %arg2: memref<8x64xf32, #tpu.memory_space<vmem>>, %arg3: memref<8x32xf32, #tpu.memory_space<vmem>>, %arg4: memref<8x64xf32, #tpu.memory_space<vmem>>) attributes {dimension_semantics = [#tpu.dimension_semantics<parallel>], iteration_bounds = array<i64: 1>, scalar_prefetch = 0 : i64, scratch_operands = 0 : i64, tpu.core_type = #tpu.core_type<tc>, window_params = [{transform_indices = @transform_0, window_bounds = array<i64: 1>}, {transform_indices = @transform_1, window_bounds = array<i64: 8, 64>}, {transform_indices = @transform_2, window_bounds = array<i64: 8, 32>}, {transform_indices = @transform_3, window_bounds = array<i64: 8, 64>}]} {
    %c0 = arith.constant 0 : index
    %c0_0 = arith.constant 0 : index
    %0 = vector.load %arg3[%c0, %c0_0] : memref<8x32xf32, #tpu.memory_space<vmem>>, vector<8x32xf32>
    %1 = tpu.concatenate %0, %0 in 1 : vector<8x32xf32>, vector<8x32xf32> -> vector<8x64xf32>
    %c0_1 = arith.constant 0 : index
    %c0_2 = arith.constant 0 : index
    %2 = vector.load %arg2[%c0_1, %c0_2] : memref<8x64xf32, #tpu.memory_space<vmem>>, vector<8x64xf32>
    %3 = arith.addf %2, %1 : vector<8x64xf32>
    %c8_i32 = arith.constant 8 : i32
    %4 = arith.muli %arg0, %c8_i32 : i32
    %5 = tpu.iota {dimensions = array<i32: 0>} : vector<8x64xi32>
    %6 = vector.broadcast %4 : i32 to vector<8x64xi32>
    %7 = arith.addi %6, %5 : vector<8x64xi32>
    %8 = tpu.iota {dimensions = array<i32: 1>} : vector<8x64xi32>
    %c64_i32 = arith.constant 64 : i32
    %9 = vector.broadcast %c64_i32 : i32 to vector<8x64xi32>
    %10 = arith.muli %7, %9 : vector<8x64xi32>
    %11 = arith.addi %10, %8 : vector<8x64xi32>
    %c0_3 = arith.constant 0 : index
    %12 = memref.load %arg1[%c0_3] : memref<1xi32, #tpu.memory_space<smem>>
    %c-1640531527_i32 = arith.constant -1640531527 : i32
    %13 = arith.muli %12, %c-1640531527_i32 : i32
    %14 = vector.broadcast %13 : i32 to vector<8x64xi32>
    %15 = arith.addi %11, %14 : vector<8x64xi32>
    %c16_i32 = arith.constant 16 : i32
    %16 = vector.broadcast %c16_i32 : i32 to vector<8x64xi32>
    %17 = arith.shrui %15, %16 : vector<8x64xi32>
    %18 = arith.xori %15, %17 : vector<8x64xi32>
    %c2146121005_i32 = arith.constant 2146121005 : i32
    %19 = vector.broadcast %c2146121005_i32 : i32 to vector<8x64xi32>
    %20 = arith.muli %18, %19 : vector<8x64xi32>
    %c15_i32 = arith.constant 15 : i32
    %21 = vector.broadcast %c15_i32 : i32 to vector<8x64xi32>
    %22 = arith.shrui %20, %21 : vector<8x64xi32>
    %23 = arith.xori %20, %22 : vector<8x64xi32>
    %c-2073254261_i32 = arith.constant -2073254261 : i32
    %24 = vector.broadcast %c-2073254261_i32 : i32 to vector<8x64xi32>
    %25 = arith.muli %23, %24 : vector<8x64xi32>
    %c16_i32_4 = arith.constant 16 : i32
    %26 = vector.broadcast %c16_i32_4 : i32 to vector<8x64xi32>
    %27 = arith.shrui %25, %26 : vector<8x64xi32>
    %28 = arith.xori %25, %27 : vector<8x64xi32>
    %c429496730_i32 = arith.constant 429496730 : i32
    %29 = vector.broadcast %c429496730_i32 : i32 to vector<8x64xi32>
    %30 = arith.cmpi uge, %28, %29 : vector<8x64xi32>
    %cst = arith.constant 1.11111116 : f32
    %31 = vector.broadcast %cst : f32 to vector<8x64xf32>
    %32 = arith.mulf %3, %31 : vector<8x64xf32>
    %cst_5 = arith.constant 0.000000e+00 : f32
    %33 = vector.broadcast %cst_5 : f32 to vector<8x64xf32>
    %34 = arith.select %30, %32, %33 : vector<8x64xi1>, vector<8x64xf32>
    %c0_6 = arith.constant 0 : index
    %c0_7 = arith.constant 0 : index
    %35 = vector.load %arg4[%c0_6, %c0_7] : memref<8x64xf32, #tpu.memory_space<vmem>>, vector<8x64xf32>
    tpu.vector_store %arg4[%c0_6, %c0_7], %34 {strides = array<i32>} : memref<8x64xf32, #tpu.memory_space<vmem>>, vector<8x64xf32>,
    return
  }
  func.func @transform_0(%arg0: i32) -> i32 {
    %c0_i32 = arith.constant 0 : i32
    %c0_i32_0 = arith.constant 0 : i32
    return %c0_i32 : i32
  }
  func.func @transform_1(%arg0: i32) -> (i32, i32) {
    %c0_i32 = arith.constant 0 : i32
    %c0_i32_0 = arith.constant 0 : i32
    return %arg0, %c0_i32 : i32, i32
  }
  func.func @transform_2(%arg0: i32) -> (i32, i32) {
    %c0_i32 = arith.constant 0 : i32
    %c0_i32_0 = arith.constant 0 : i32
    return %arg0, %c0_i32 : i32, i32
  }
  func.func @transform_3(%arg0: i32) -> (i32, i32) {
    %c0_i32 = arith.constant 0 : i32
    %c0_i32_0 = arith.constant 0 : i32
    return %arg0, %c0_i32 : i32, i32
  }
}

</mosaic_0001>

<llo_original>
// kernel: tpu_custom_call.1
$region0: #{tpu_custom_call.1}
  #allocation0 [shape = 'u32[]', space=smem, size = 0x4, offset = 0x4, fixed_abs, tag = 'smem constant byte address 0x4 - core index']
  #allocation1 [shape = 'u32[72,128]{1,0:T(1,128)}', space=vmem, size = 0x9000, scoped, tag = 'internal scratch']
  #allocation2 [shape = 's32[1]{0:T(128)S(6)}', space=smem, size = 0x200, scoped, tag = 'scoped memory for tpu_custom_call.1']
  %s0 = inlined_call_operand.<no memory space> [shape: s32[1], index: 0, kind: input, shape index: {}]
  %s1 = inlined_call_operand.hbm [shape: f32[8,64], index: 1, kind: input, shape index: {}]
  %s2 = inlined_call_operand.hbm [shape: f32[8,32], index: 2, kind: input, shape index: {}]
  %s3 = inlined_call_operand.hbm [shape: f32[8,64], index: 3, kind: output, shape index: {}]
  %s4 = sld [smem:[#allocation0]]
  $region30: #{tpu_custom_call.1} parent=0
    _
  %s6 = ssub.s32 1, %s4
  %s7 = scalar_select 0, %s6, %s4
  %8 = sst [smem:[#allocation2]] %s0
  $region1: #{tpu_custom_call.1} parent=0
    #allocation3 [shape = 'u8[4096]{0}', space=vmem, size = 0x1000, scoped, tag = 'input window, operand 1, single buffered']
    #allocation4 [shape = 's32[1]{0}', space=sflag, size = 0x4, scoped, tag = 'scoped memory for tpu_custom_call.1']
    #allocation5 [shape = 's32[1]{0}', space=sflag, size = 0x4, scoped, tag = 'scoped memory for tpu_custom_call.1']
    #allocation6 [shape = 'u8[4096]{0}', space=vmem, size = 0x1000, scoped, tag = 'input window, operand 2, single buffered']
    #allocation7 [shape = 's32[1]{0}', space=sflag, size = 0x4, scoped, tag = 'scoped memory for tpu_custom_call.1']
    #allocation8 [shape = 'u8[4096]{0}', space=vmem, size = 0x1000, scoped, tag = 'output window, operand 0, single buffered']
    %9 = vsyncpa [#allocation4], 0
    %10 = vsyncpa [#allocation7], 0
    %11 = vsyncpa [#allocation5], 0
    // Predicated region
    $region2: #{tpu_custom_call.1} parent=1 // pred_check
      _
    $region3: #{tpu_custom_call.1} parent=1 // pred_check_branch
      %13 = sbr.rel (0) target = $region5
    $region4: #{tpu_custom_call.1} parent=1 // pred_region
      _
    $region5: #{tpu_custom_call.1} parent=1 // pred_fallthru
      _
    // Predicated region
    $region6: #{tpu_custom_call.1} parent=1 // pred_check
      _
    $region7: #{tpu_custom_call.1} parent=1 // pred_check_branch
      %15 = sbr.rel (0) target = $region9
    $region8: #{tpu_custom_call.1} parent=1 // pred_region
      %17 = vsyncadd [#allocation4], 0
      %s19 = sshll.u32 %s1, 4
      %s20 = int_to_ptr.hbm [resolvable:$true] %s19
      %s21 = sshll.u32 [#allocation3], 4
      %s22 = int_to_ptr.vmem [resolvable:$true] %s21
      %24 = dma.hbm_to_vmem [thread:$0]  %s20, 128, %s22, [#allocation4]
    $region9: #{tpu_custom_call.1} parent=1 // pred_fallthru
      _
    // Predicated region
    $region10: #{tpu_custom_call.1} parent=1 // pred_check
      _
    $region11: #{tpu_custom_call.1} parent=1 // pred_check_branch
      %26 = sbr.rel (0) target = $region13
    $region12: #{tpu_custom_call.1} parent=1 // pred_region
      %28 = vsyncadd [#allocation7], 0
      %s30 = sshll.u32 %s2, 4
      %s31 = int_to_ptr.hbm [resolvable:$true] %s30
      %s32 = sshll.u32 [#allocation6], 4
      %s33 = int_to_ptr.vmem [resolvable:$true] %s32
      %35 = dma.hbm_to_vmem [thread:$0]  %s31, 128, %s33, [#allocation7]
    $region13: #{tpu_custom_call.1} parent=1 // pred_fallthru
      _
    // Predicated region
    $region14: #{tpu_custom_call.1} parent=1 // pred_check
      _
    $region15: #{tpu_custom_call.1} parent=1 // pred_check_branch
      %37 = sbr.rel (0) target = $region17
    $region16: #{tpu_custom_call.1} parent=1 // pred_region
      %39 = dma.done [#allocation4], 128
    $region17: #{tpu_custom_call.1} parent=1 // pred_fallthru
      _
    // Predicated region
    $region18: #{tpu_custom_call.1} parent=1 // pred_check
      _
    $region19: #{tpu_custom_call.1} parent=1 // pred_check_branch
      %41 = sbr.rel (0) target = $region21
    $region20: #{tpu_custom_call.1} parent=1 // pred_region
      %43 = dma.done [#allocation7], 128
    $region21: #{tpu_custom_call.1} parent=1 // pred_fallthru
      _
    %v44 = vld [vmem:[#allocation6] sm:$0xff]
    %46 = vrot.lane.b32.xlu0 %v44, 32
    %v47 = vpop.permute.xlu0 %46
    %vm49 = vcmask 261120
    %v50 = vsel %vm49, %v44, %v47
    %v51 = vld [vmem:[#allocation3] sm:$0xff]
    %v52 = vadd.f32 %v51, %v50
    %s53 = smul.u32 0, 8
    %v54 = vlaneseq
    %v55 = vshrl.u32 %v54, 7
    %v56 = vstv %s53
    %v57 = vadd.s32 %v56, %v55
    %v58 = vlaneseq
    %v59 = vand.u32 %v58, 127
    %v60 = vmul.u32 %v57, 64
    %v61 = vadd.s32 %v60, %v59
    %s62 = sld [smem:[#allocation2]]
    %s63 = smul.u32 %s62, 2654435769
    %v64 = vstv %s63
    %v65 = vadd.s32 %v61, %v64
    %v66 = vshrl.u32 %v65, 16
    %v67 = vxor.u32 %v65, %v66
    %v68 = vmul.u32 %v67, 2146121005
    %v69 = vshrl.u32 %v68, 15
    %v70 = vxor.u32 %v68, %v69
    %v71 = vmul.u32 %v70, 2221713035
    %v72 = vshrl.u32 %v71, 16
    %v73 = vxor.u32 %v71, %v72
    %v74 = vadd.s32 %v73, 2147483648
    %vm76 = vcmp.ge.s32.totalorder %v74, 2576980378
    %v77 = vmul.f32 %v52, 1.1111112
    %v78 = vsel %vm76, %v77, 0.0
    %vm79 = vcmask 523264
    %80 = vst.msk [vmem:[#allocation8] sm:$0xff] %vm79, %v78
    // Predicated region
    $region22: #{tpu_custom_call.1} parent=1 // pred_check
      _
    $region23: #{tpu_custom_call.1} parent=1 // pred_check_branch
      %82 = sbr.rel (0) target = $region25
    $region24: #{tpu_custom_call.1} parent=1 // pred_region
      %84 = vsyncadd [#allocation5], 0
      %s86 = sshll.u32 [#allocation8], 4
      %s87 = int_to_ptr.vmem [resolvable:$true] %s86
      %s88 = sshll.u32 %s3, 4
      %s89 = int_to_ptr.hbm [resolvable:$true] %s88
      %91 = dma.vmem_to_hbm [thread:$0]  %s87, 128, %s89, [#allocation5]
    $region25: #{tpu_custom_call.1} parent=1 // pred_fallthru
      _
    // Predicated region
    $region26: #{tpu_custom_call.1} parent=1 // pred_check
      _
    $region27: #{tpu_custom_call.1} parent=1 // pred_check_branch
      %93 = sbr.rel (0) target = $region29
    $region28: #{tpu_custom_call.1} parent=1 // pred_region
      %95 = dma.done [#allocation5], 128
    $region29: #{tpu_custom_call.1} parent=1 // pred_fallthru
      _
    %96 = vsyncpa [#allocation4], 1
    %97 = vsyncpa [#allocation7], 1
    %98 = vsyncpa [#allocation5], 1

</llo_original>
